<compile_context>
chip_gen: v7x
topology: tpu7x:2x2x1
jax: 0.10.0
libtpu: 0.0.40
codegen_flags: <defaults>
</compile_context>

<pallas_src>
import functools

import jax
import jax.numpy as jnp
from jax.experimental import pallas as pl
from jax.experimental.pallas import tpu as pltpu


# ----------------------------------------------------------------------------
# Tiling helpers
# ----------------------------------------------------------------------------

def _pick_row_tile(rows, cap=1024):
    """Largest row tile <= cap that divides rows (full rows if small / no divisor)."""
    if rows <= cap:
        return rows
    for t in (1024, 512, 256, 128, 64, 32, 16, 8):
        if rows % t == 0:
            return t
    return rows


def _pick_m_tile(m):
    for t in (256, 128, 64, 32, 16, 8):
        if m % t == 0:
            return t
    return m  # full M (block dim equal to full array dim is allowed)


# ----------------------------------------------------------------------------
# MXU matmul (im2col path for stride-2 convs + 7x7 stem conv + 1x1 downsample):
# bf16 inputs, f32 accumulate, full-K weight resident, (M, N)-tiled parallel grid
# ----------------------------------------------------------------------------

def _matmul_kernel(a_ref, b_ref, o_ref):
    o_ref[...] = jnp.dot(a_ref[...], b_ref[...],
                         preferred_element_type=jnp.float32).astype(o_ref.dtype)


def pallas_matmul(a, b, out_dtype=jnp.bfloat16):
    """a: (M, K), b: (K, N) -> (M, N).  Full-K weights stay resident in VMEM."""
    M, K = a.shape
    K2, N = b.shape
    assert K == K2
    a = a.astype(jnp.bfloat16)
    b = b.astype(jnp.bfloat16)
    tm = _pick_m_tile(M)
    tn = 256 if (N % 256 == 0 and N > 256) else N
    return pl.pallas_call(
        _matmul_kernel,
        out_shape=jax.ShapeDtypeStruct((M, N), out_dtype),
        grid=(M // tm, N // tn),
        in_specs=[
            pl.BlockSpec((tm, K), lambda i, j: (i, 0)),
            pl.BlockSpec((K, tn), lambda i, j: (0, j)),
        ],
        out_specs=pl.BlockSpec((tm, tn), lambda i, j: (i, j)),
        compiler_params=pltpu.CompilerParams(
            dimension_semantics=("parallel", "parallel")),
    )(a, b)


# ----------------------------------------------------------------------------
# Direct stride-1 conv (flat-shift taps) with fused per-image BN statistics
# ----------------------------------------------------------------------------

def _dconv_kernel(x_ref, w_ref, o_ref, stat_ref, acc_ref, *,
                  tap_offsets, rout, wp, ow):
    # x_ref:    (1, Rin, Cin)  bf16  (flattened padded image + kw-1 extra rows)
    # w_ref:    (T, Cin, Cout) bf16  (resident; constant index map)
    # o_ref:    (1, Rout, Cout) bf16 (wide output: OH * Wp rows)
    # stat_ref: (1, 2, Cout)   f32   (masked per-image sum / sum-of-squares)
    a0 = x_ref[0, pl.ds(tap_offsets[0], rout), :]
    acc_ref[...] = jnp.dot(a0, w_ref[0], preferred_element_type=jnp.float32)
    for t in range(1, len(tap_offsets)):
        a = x_ref[0, pl.ds(tap_offsets[t], rout), :]
        acc_ref[...] += jnp.dot(a, w_ref[t], preferred_element_type=jnp.float32)
    acc = acc_ref[...]
    o_ref[0] = acc.astype(o_ref.dtype)
    # Masked BN statistics: rows with (r mod Wp) >= OW are padded garbage columns.
    col = jax.lax.broadcasted_iota(jnp.int32, (rout, 1), 0) % wp
    acc_valid = jnp.where(col < ow, acc, 0.0)
    stat_ref[0, 0:1, :] = jnp.sum(acc_valid, axis=0, keepdims=True)
    stat_ref[0, 1:2, :] = jnp.sum(acc_valid * acc, axis=0, keepdims=True)


def conv2d_s1_direct(x, w):
    """Stride-1 conv, padding (k-1)//2.  x: NHWC, w: (Cout, Cin, kh, kw).

    Returns (wide, stats, OW): wide is (N, OH, Wp, Cout) bf16 where only columns
    [0, OW) are valid; stats is (2, Cout) f32 [sum, sum_sq] over valid positions.
    """
    N, H, W, Cin = x.shape
    Cout, Cin2, kh, kw = w.shape
    assert Cin == Cin2
    p = (kh - 1) // 2
    Hp, Wp = H + 2 * p, W + 2 * p
    OH, OW = Hp - kh + 1, Wp - kw + 1

    xb = x.astype(jnp.bfloat16)
    if p:
        xb = jnp.pad(xb, ((0, 0), (p, p), (p, p), (0, 0)))
    rin = Hp * Wp + (kw - 1)
    x_flat = jnp.pad(xb.reshape(N, Hp * Wp, Cin), ((0, 0), (0, kw - 1), (0, 0)))
    w_taps = jnp.transpose(w, (2, 3, 1, 0)).reshape(kh * kw, Cin, Cout)
    w_taps = w_taps.astype(jnp.bfloat16)

    rout = OH * Wp
    tap_offsets = tuple(i * Wp + j for i in range(kh) for j in range(kw))
    kern = functools.partial(_dconv_kernel, tap_offsets=tap_offsets,
                             rout=rout, wp=Wp, ow=OW)

    out_flat, stats_n = pl.pallas_call(
        kern,
        out_shape=(jax.ShapeDtypeStruct((N, rout, Cout), jnp.bfloat16),
                   jax.ShapeDtypeStruct((N, 2, Cout), jnp.float32)),
        grid=(N,),
        in_specs=[
            pl.BlockSpec((1, rin, Cin), lambda n: (n, 0, 0)),
            pl.BlockSpec((kh * kw, Cin, Cout), lambda n: (0, 0, 0)),
        ],
        out_specs=[
            pl.BlockSpec((1, rout, Cout), lambda n: (n, 0, 0)),
            pl.BlockSpec((1, 2, Cout), lambda n: (n, 0, 0)),
        ],
        scratch_shapes=[pltpu.VMEM((rout, Cout), jnp.float32)],
        compiler_params=pltpu.CompilerParams(
            dimension_semantics=("parallel",)),
    )(x_flat, w_taps)

    wide = out_flat.reshape(N, OH, Wp, Cout)
    stats = jnp.sum(stats_n, axis=0)          # tiny (N, 2, C) combine in glue
    return wide, stats, OW


# ----------------------------------------------------------------------------
# Convolution via im2col (only stride-2 convs, 7x7 stem conv, 1x1 downsamples)
# ----------------------------------------------------------------------------

def conv2d_im2col(x, w, *, stride, padding):
    """x: NHWC, w: (Cout, Cin, kh, kw).  Returns clean NHWC bf16."""
    N, H, W, Cin = x.shape
    Cout, Cin2, kh, kw = w.shape
    assert Cin == Cin2
    OH = (H + 2 * padding - kh) // stride + 1
    OW = (W + 2 * padding - kw) // stride + 1
    xb = x.astype(jnp.bfloat16)
    if padding:
        xb = jnp.pad(xb, ((0, 0), (padding, padding), (padding, padding), (0, 0)))
    if kh == 1 and kw == 1:
        patches = xb[:, ::stride, ::stride, :].reshape(N * OH * OW, Cin)
    else:
        # TODO(synk): the few stride-2 3x3/7x7 convs still materialize im2col
        # patches in HBM; a 4-phase split feeding the stride-1 direct-conv kernel
        # would remove this remaining read/write amplification.
        cols = [xb[:, i:i + stride * OH:stride, j:j + stride * OW:stride, :]
                for i in range(kh) for j in range(kw)]
        patches = jnp.concatenate(cols, axis=-1).reshape(N * OH * OW, kh * kw * Cin)
    w_mat = jnp.transpose(w, (2, 3, 1, 0)).reshape(kh * kw * Cin, Cout)
    out = pallas_matmul(patches, w_mat, out_dtype=jnp.bfloat16)
    return out.reshape(N, OH, OW, Cout)


# ----------------------------------------------------------------------------
# BatchNorm (train-mode batch stats):
#   - standalone stats kernel (for the im2col conv path)
#   - apply kernel with fused residual-add / ReLU, consuming the wide layout
# ----------------------------------------------------------------------------

def _bn_stats_kernel(x_ref, o_ref):
    @pl.when(pl.program_id(0) == 0)
    def _():
        o_ref[...] = jnp.zeros_like(o_ref)

    x = x_ref[...].astype(jnp.float32)
    o_ref[0:1, :] += jnp.sum(x, axis=0, keepdims=True)
    o_ref[1:2, :] += jnp.sum(x * x, axis=0, keepdims=True)


def pallas_bn_stats(x2d):
    """x2d: (R, C) bf16/f32 -> (2, C) f32 [sum, sum_sq] (resident accumulator)."""
    R, C = x2d.shape
    tr = _pick_row_tile(R)
    return pl.pallas_call(
        _bn_stats_kernel,
        out_shape=jax.ShapeDtypeStruct((2, C), jnp.float32),
        grid=(R // tr,),
        in_specs=[pl.BlockSpec((tr, C), lambda i: (i, 0))],
        out_specs=pl.BlockSpec((2, C), lambda i: (0, 0)),
        compiler_params=pltpu.CompilerParams(
            dimension_semantics=("arbitrary",)),
    )(x2d)


def _bn_apply_kernel(*refs, count, eps, relu, residual, ow):
    if residual:
        x_ref, res_ref, stats_ref, g_ref, b_ref, o_ref = refs
    else:
        x_ref, stats_ref, g_ref, b_ref, o_ref = refs
        res_ref = None
    inv_n = 1.0 / count
    mean = stats_ref[0:1, :] * inv_n
    # Biased variance (PyTorch train-mode BN); clamp guards the one-pass
    # E[x^2] - E[x]^2 formulation (accumulated in f32) against cancellation.
    var = jnp.maximum(stats_ref[1:2, :] * inv_n - mean * mean, 0.0)
    scale = g_ref[...] * jax.lax.rsqrt(var + eps)             # (1, C)
    shift = b_ref[...] - mean * scale                          # (1, C)
    c = scale.shape[-1]
    x = x_ref[0, :, :ow, :].astype(jnp.float32)                # (OH, OW, C)
    y = x * scale.reshape(1, 1, c) + shift.reshape(1, 1, c)
    if residual:
        y = y + res_ref[0].astype(jnp.float32)
    if relu:
        y = jnp.maximum(y, 0.0)
    o_ref[0] = y.astype(o_ref.dtype)


def pallas_bn_apply(x_wide, stats, gamma, beta, *, ow, relu,
                    residual=None, eps=1e-5):
    """x_wide: (N, OH, Wp, C); only columns [0, ow) are valid.

    Returns the clean (N, OH, ow, C) bf16 result with optional residual + ReLU.
    """
    N, OH, WP, C = x_wide.shape
    count = float(N * OH * ow)
    g = gamma.reshape(1, C).astype(jnp.float32)
    b = beta.reshape(1, C).astype(jnp.float32)

    inputs = [x_wide.astype(jnp.bfloat16)]
    in_specs = [pl.BlockSpec((1, OH, WP, C), lambda n: (n, 0, 0, 0))]
    if residual is not None:
        inputs.append(residual.astype(jnp.bfloat16))
        in_specs.append(pl.BlockSpec((1, OH, ow, C), lambda n: (n, 0, 0, 0)))
    inputs += [stats.astype(jnp.float32), g, b]
    in_specs += [
        pl.BlockSpec((2, C), lambda n: (0, 0)),
        pl.BlockSpec((1, C), lambda n: (0, 0)),
        pl.BlockSpec((1, C), lambda n: (0, 0)),
    ]

    kern = functools.partial(_bn_apply_kernel, count=count, eps=eps, relu=relu,
                             residual=residual is not None, ow=ow)
    return pl.pallas_call(
        kern,
        out_shape=jax.ShapeDtypeStruct((N, OH, ow, C), jnp.bfloat16),
        grid=(N,),
        in_specs=in_specs,
        out_specs=pl.BlockSpec((1, OH, ow, C), lambda n: (n, 0, 0, 0)),
        compiler_params=pltpu.CompilerParams(
            dimension_semantics=("parallel",)),
    )(*inputs)


# ----------------------------------------------------------------------------
# 3x3 / stride-2 maxpool (stem): one kernel over 4 even/odd phase views
# ----------------------------------------------------------------------------

def _maxpool_kernel(p00_ref, p01_ref, p10_ref, p11_ref, o_ref, *, oh, ow):
    refs = ((p00_ref, p01_ref), (p10_ref, p11_ref))
    out = None
    for i in range(3):
        for j in range(3):
            r = refs[i % 2][j % 2]
            v = r[0, i // 2:i // 2 + oh, j // 2:j // 2 + ow, :]
            out = v if out is None else jnp.maximum(out, v)
    o_ref[0] = out


def pallas_maxpool_3x3_s2(x):
    """x: NHWC bf16 (H, W even); 3x3 max pool, stride 2, padding 1."""
    N, H, W, C = x.shape
    assert H % 2 == 0 and W % 2 == 0
    OH, OW = H // 2, W // 2
    neg = float(jnp.finfo(jnp.bfloat16).min)
    xp = jnp.pad(x, ((0, 0), (1, 1), (1, 1), (0, 0)), constant_values=neg)
    # Even/odd phase split: one ~1x copy in glue, then all 9 taps are contiguous
    # in-kernel slices of the 4 phases (no 9x strided HBM views).
    phases = [xp[:, a::2, b::2, :] for a in (0, 1) for b in (0, 1)]
    kern = functools.partial(_maxpool_kernel, oh=OH, ow=OW)
    spec_in = pl.BlockSpec((1, OH + 1, OW + 1, C), lambda n: (n, 0, 0, 0))
    return pl.pallas_call(
        kern,
        out_shape=jax.ShapeDtypeStruct((N, OH, OW, C), jnp.bfloat16),
        grid=(N,),
        in_specs=[spec_in] * 4,
        out_specs=pl.BlockSpec((1, OH, OW, C), lambda n: (n, 0, 0, 0)),
        compiler_params=pltpu.CompilerParams(
            dimension_semantics=("parallel",)),
    )(*phases)


# ----------------------------------------------------------------------------
# Fused global average pool + linear head (output padded to 128 lanes)
# ----------------------------------------------------------------------------

def _avgpool_head_kernel(x_ref, w_ref, b_ref, o_ref, *, inv_hw):
    feat = jnp.sum(x_ref[...].astype(jnp.float32), axis=1) * inv_hw   # (N, C)
    o_ref[...] = jnp.dot(feat, w_ref[...],
                         preferred_element_type=jnp.float32) + b_ref[...]


def pallas_avgpool_head(x, head_w, head_b):
    """x: (N, H, W, C) bf16; head_w: (num_classes, C); head_b: (num_classes,)."""
    N, H, W, C = x.shape
    nc = head_w.shape[0]
    P = 128  # lane-dense padded head width; sliced back to nc outside.
    w_pad = jnp.zeros((C, P), jnp.float32).at[:, :nc].set(
        head_w.T.astype(jnp.float32))
    b_pad = jnp.zeros((1, P), jnp.float32).at[:, :nc].set(
        head_b.astype(jnp.float32).reshape(1, nc))
    x2 = x.reshape(N, H * W, C)
    # TODO(synk): batch is processed in one grid step; tile over N for large batches.
    out = pl.pallas_call(
        functools.partial(_avgpool_head_kernel, inv_hw=1.0 / (H * W)),
        out_shape=jax.ShapeDtypeStruct((N, P), jnp.float32),
        grid=(1,),
        in_specs=[
            pl.BlockSpec((N, H * W, C), lambda i: (0, 0, 0)),
            pl.BlockSpec((C, P), lambda i: (0, 0)),
            pl.BlockSpec((1, P), lambda i: (0, 0)),
        ],
        out_specs=pl.BlockSpec((N, P), lambda i: (0, 0)),
    )(x2, w_pad, b_pad)
    return out[:, :nc]


# ----------------------------------------------------------------------------
# ResNet18 forward (conv1/bn1/relu/maxpool/layer1..4/avgpool/flatten/head)
# ----------------------------------------------------------------------------

def basic_block(x, p):
    stride = p["stride"]
    cout = p["conv1_w"].shape[0]

    # conv1 -> bn1 -> relu
    if stride == 1:
        wide, stats, ow = conv2d_s1_direct(x, p["conv1_w"])
    else:
        out = conv2d_im2col(x, p["conv1_w"], stride=stride, padding=1)
        stats = pallas_bn_stats(out.reshape(-1, cout))
        wide, ow = out, out.shape[2]
    y = pallas_bn_apply(wide, stats, p["bn1_g"], p["bn1_b"], ow=ow, relu=True)

    # conv2 (stride 1) -> bn2 (+ residual add) -> relu   (all fused in bn apply)
    wide2, stats2, ow2 = conv2d_s1_direct(y, p["conv2_w"])
    if "down_w" in p:
        idn = conv2d_im2col(x, p["down_w"], stride=stride, padding=0)
        dstats = pallas_bn_stats(idn.reshape(-1, cout))
        idn = pallas_bn_apply(idn, dstats, p["down_bn_g"], p["down_bn_b"],
                              ow=idn.shape[2], relu=False)
    else:
        idn = x
    return pallas_bn_apply(wide2, stats2, p["bn2_g"], p["bn2_b"], ow=ow2,
                           relu=True, residual=idn)


def domain_classifier_forward(x_nchw, params):
    # NCHW (PyTorch) -> NHWC internal compute layout.
    x = jnp.transpose(x_nchw, (0, 2, 3, 1))

    # Stem: conv1 (7x7 s2 p3) -> bn1 -> relu -> maxpool (3x3 s2 p1)
    out = conv2d_im2col(x, params["conv1_w"], stride=2, padding=3)
    stats = pallas_bn_stats(out.reshape(-1, out.shape[-1]))
    x = pallas_bn_apply(out, stats, params["bn1_g"], params["bn1_b"],
                        ow=out.shape[2], relu=True)
    x = pallas_maxpool_3x3_s2(x)

    # layer1..layer4 (2 BasicBlocks each)
    for layer_name in ("layer1", "layer2", "layer3", "layer4"):
        for bp in params[layer_name]:
            x = basic_block(x, bp)

    # avgpool -> flatten -> head (single fused kernel)
    return pallas_avgpool_head(x, params["head_w"], params["head_b"])


# ----------------------------------------------------------------------------
# Deterministic synthetic parameter initialization (ResNet18 shapes + head)
# ----------------------------------------------------------------------------

def init_params(key, num_classes):
    keys = iter(jax.random.split(key, 64))

    def conv(cout, cin, kh, kw):
        fan_in = cin * kh * kw
        return (jax.random.normal(next(keys), (cout, cin, kh, kw), jnp.float32)
                * (2.0 / fan_in) ** 0.5)

    def bn(c):
        return jnp.ones((c,), jnp.float32), jnp.zeros((c,), jnp.float32)

    params = {}
    params["conv1_w"] = conv(64, 3, 7, 7)
    params["bn1_g"], params["bn1_b"] = bn(64)

    cfg = [("layer1", 64, 64, 1), ("layer2", 64, 128, 2),
           ("layer3", 128, 256, 2), ("layer4", 256, 512, 2)]
    for name, cin, cout, stride in cfg:
        blocks = []
        for b in range(2):
            s = stride if b == 0 else 1
            in_c = cin if b == 0 else cout
            bp = {"stride": s,
                  "conv1_w": conv(cout, in_c, 3, 3),
                  "conv2_w": conv(cout, cout, 3, 3)}
            bp["bn1_g"], bp["bn1_b"] = bn(cout)
            bp["bn2_g"], bp["bn2_b"] = bn(cout)
            if s != 1 or in_c != cout:
                bp["down_w"] = conv(cout, in_c, 1, 1)
                bp["down_bn_g"], bp["down_bn_b"] = bn(cout)
            blocks.append(bp)
        params[name] = blocks

    kw_, kb_ = jax.random.split(next(keys))
    params["head_w"] = (jax.random.normal(kw_, (num_classes, 512), jnp.float32)
                        * (1.0 / 512.0) ** 0.5)
    params["head_b"] = jax.random.normal(kb_, (num_classes,), jnp.float32) * 0.01
    return params


if __name__ == "__main__":
    # TODO(synk): torchvision pretrained weights / optimizer / loss / softmax are
    # training plumbing, not part of forward(); parameters here are synthetic.
    num_classes = 7
    key = jax.random.PRNGKey(0)
    pkey, xkey = jax.random.split(key)
    params = init_params(pkey, num_classes)

    # Small image consistent with ResNet18's /32 downsampling (NCHW like PyTorch).
    x = jax.random.normal(xkey, (2, 3, 64, 64), jnp.float32)

    logits = domain_classifier_forward(x, params)
    jax.block_until_ready(logits)
    assert logits.shape == (2, num_classes)
    assert bool(jnp.all(jnp.isfinite(logits)))
    print("KERNEL_OK")
</pallas_src>

<mosaic_0001>
module attributes {stable_mosaic.version = 11 : i64} {
  func.func @_matmul_kernel(%arg0: i32, %arg1: i32, %arg2: memref<256x147xbf16, #tpu.memory_space<vmem>>, %arg3: memref<147x64xbf16, #tpu.memory_space<vmem>>, %arg4: memref<256x64xbf16, #tpu.memory_space<vmem>>) attributes {dimension_semantics = [#tpu.dimension_semantics<parallel>, #tpu.dimension_semantics<parallel>], iteration_bounds = array<i64: 8, 1>, scalar_prefetch = 0 : i64, scratch_operands = 0 : i64, tpu.core_type = #tpu.core_type<tc>, window_params = [{transform_indices = @transform_0, window_bounds = array<i64: 256, 147>}, {transform_indices = @transform_1, window_bounds = array<i64: 147, 64>}, {transform_indices = @transform_2, window_bounds = array<i64: 256, 64>}]} {
    %c0 = arith.constant 0 : index
    %c0_0 = arith.constant 0 : index
    %0 = vector.load %arg2[%c0, %c0_0] : memref<256x147xbf16, #tpu.memory_space<vmem>>, vector<256x147xbf16>
    %c0_1 = arith.constant 0 : index
    %c0_2 = arith.constant 0 : index
    %1 = vector.load %arg3[%c0_1, %c0_2] : memref<147x64xbf16, #tpu.memory_space<vmem>>, vector<147x64xbf16>
    %cst = arith.constant dense<0.000000e+00> : vector<256x64xf32>
    %2 = tpu.matmul %0, %1, %cst {dimension_numbers = #tpu.dot_dimension_numbers<[1], [0], [0], [1], [0, 0, 1, 1], [], []>} : vector<256x147xbf16>, vector<147x64xbf16>, vector<256x64xf32> -> vector<256x64xf32>
    %3 = arith.truncf %2 : vector<256x64xf32> to vector<256x64xbf16>
    %c0_3 = arith.constant 0 : index
    %c0_4 = arith.constant 0 : index
    %4 = vector.load %arg4[%c0_3, %c0_4] : memref<256x64xbf16, #tpu.memory_space<vmem>>, vector<256x64xbf16>
    tpu.vector_store %arg4[%c0_3, %c0_4], %3 {strides = array<i32>} : memref<256x64xbf16, #tpu.memory_space<vmem>>, vector<256x64xbf16>,
    return
  }
  func.func @transform_0(%arg0: i32, %arg1: i32) -> (i32, i32) {
    %c0_i32 = arith.constant 0 : i32
    %c0_i32_0 = arith.constant 0 : i32
    return %arg0, %c0_i32 : i32, i32
  }
  func.func @transform_1(%arg0: i32, %arg1: i32) -> (i32, i32) {
    %c0_i32 = arith.constant 0 : i32
    %c0_i32_0 = arith.constant 0 : i32
    return %c0_i32, %arg1 : i32, i32
  }
  func.func @transform_2(%arg0: i32, %arg1: i32) -> (i32, i32) {
    %c0_i32 = arith.constant 0 : i32
    return %arg0, %arg1 : i32, i32
  }
}

</mosaic_0001>

<llo_original>
// kernel: tpu_custom_call.1
$region0: #{tpu_custom_call.1}
  #allocation0 [shape = 'u32[]', space=smem, size = 0x4, offset = 0x4, fixed_abs, tag = 'smem constant byte address 0x4 - core index']
  #allocation1 [shape = 'u32[144,128]{1,0:T(1,128)}', space=vmem, size = 0x12000, scoped, tag = 'internal scratch']
  %s0 = inlined_call_operand.vmem [shape: bf16[2048,147], index: 0, kind: input, shape index: {}]
  %s1 = inlined_call_operand.vmem [shape: bf16[147,64], index: 1, kind: input, shape index: {}]
  %s2 = inlined_call_operand.vmem [shape: bf16[2048,64], index: 2, kind: output, shape index: {}]
  %s3 = sld [smem:[#allocation0]]
  $region41: #{tpu_custom_call.1} parent=0
    _
  %s5 = ssub.s32 1, %s3
  %s6 = scalar_select 0, %s5, %s3
  loop: start=0, step=1, limit=10
  $region2: #{tpu_custom_call.1} parent=0 // loop_pre_header
    _
  $region3: #{tpu_custom_call.1} parent=0 // loop_header
    %s8 = sphi 0, %s12
    %p9 = scmp.ge.s32.totalorder %s8, 10
    %s15 = sphi 0, %s27
    %s16 = sphi 0, %s23
    %s17 = sphi 0, %s15
    %s18 = sphi 0, %s16
    %s19 = sphi 0, %s17
    %s20 = sphi 0, %s18
    %s30 = sphi 0, %s32
    %s33 = sphi 0, %s30
    %s34 = sphi 0, %s33
    %s50 = sphi 0, %s34
    %s56 = sphi 0, %s58
    %s59 = sphi 0, %s56
    %s60 = sphi 0, %s59
    %s76 = sphi 0, %s60
    %s84 = sphi 0, %s86
    %s87 = sphi 0, %s84
    %s88 = sphi 0, %s87
    %s104 = sphi 0, %s88
  $region4: #{tpu_custom_call.1} parent=0 // loop_header_branch
    %11 = sbr.rel (%p9) target = $region8
  $region5: #{tpu_custom_call.1} parent=0 // loop_body
    %s13 = ssub.s32 %s8, 1
    %s14 = ssub.s32 %s8, 2
    %s21 = sadd.s32 1, %s16
    %p22 = scmp.ge.s32.totalorder %s21, 1
    %s23 = scalar_select %p22, 0, %s21
    %s24 = sadd.s32 1, %s15
    %s25 = scalar_select %p22, %s24, %s15
    %p26 = scmp.ge.s32.totalorder %s25, 8
    %s27 = scalar_select %p26, 0, %s25
    %s28 = ssub.s32 %s15, %s27
    %p29 = scmp.eq.s32.totalorder %s28, 0
    %s31 = sadd.s32 %s30, 1
    %s32 = scalar_select %p29, %s30, %s31
    %p35 = pneg %p29
    %p36 = scmp.eq.s32.totalorder %s8, 7
    %p37 = por %p35, %p36
    %p38 = scmp.ne.s32.totalorder %s30, %s33
    %p39 = scmp.eq.s32.totalorder %s8, 0
    %p40 = por %p38, %p39
    %p41 = scmp.ne.s32.totalorder %s30, %s33
    %p42 = scmp.eq.s32.totalorder %s13, 7
    %p43 = por %p41, %p42
    %p44 = scmp.ne.s32.totalorder %s33, %s34
    %p45 = scmp.eq.s32.totalorder %s13, 0
    %p46 = por %p44, %p45
    %p47 = scmp.ne.s32.totalorder %s33, %s34
    %p48 = scmp.eq.s32.totalorder %s14, 7
    %p49 = por %p47, %p48
    %p51 = scmp.ne.s32.totalorder %s34, %s50
    %p52 = scmp.eq.s32.totalorder %s14, 0
    %p53 = por %p51, %p52
    %s54 = ssub.s32 %s16, %s23
    %p55 = scmp.eq.s32.totalorder %s54, 0
    %s57 = sadd.s32 %s56, 1
    %s58 = scalar_select %p55, %s56, %s57
    %p61 = pneg %p55
    %p62 = scmp.eq.s32.totalorder %s8, 7
    %p63 = por %p61, %p62
    %p64 = scmp.ne.s32.totalorder %s56, %s59
    %p65 = scmp.eq.s32.totalorder %s8, 0
    %p66 = por %p64, %p65
    %p67 = scmp.ne.s32.totalorder %s56, %s59
    %p68 = scmp.eq.s32.totalorder %s13, 7
    %p69 = por %p67, %p68
    %p70 = scmp.ne.s32.totalorder %s59, %s60
    %p71 = scmp.eq.s32.totalorder %s13, 0
    %p72 = por %p70, %p71
    %p73 = scmp.ne.s32.totalorder %s59, %s60
    %p74 = scmp.eq.s32.totalorder %s14, 7
    %p75 = por %p73, %p74
    %p77 = scmp.ne.s32.totalorder %s60, %s76
    %p78 = scmp.eq.s32.totalorder %s14, 0
    %p79 = por %p77, %p78
    %s80 = ssub.s32 %s15, %s27
    %s81 = ssub.s32 %s16, %s23
    %s82 = sor.u32 %s80, %s81
    %p83 = scmp.eq.s32.totalorder %s82, 0
    %s85 = sadd.s32 %s84, 1
    %s86 = scalar_select %p83, %s84, %s85
    %p89 = pneg %p83
    %p90 = scmp.eq.s32.totalorder %s8, 7
    %p91 = por %p89, %p90
    %p92 = scmp.ne.s32.totalorder %s84, %s87
    %p93 = scmp.eq.s32.totalorder %s8, 0
    %p94 = por %p92, %p93
    %p95 = scmp.ne.s32.totalorder %s84, %s87
    %p96 = scmp.eq.s32.totalorder %s13, 7
    %p97 = por %p95, %p96
    %p98 = scmp.ne.s32.totalorder %s87, %s88
    %p99 = scmp.eq.s32.totalorder %s13, 0
    %p100 = por %p98, %p99
    %p101 = scmp.ne.s32.totalorder %s87, %s88
    %p102 = scmp.eq.s32.totalorder %s14, 7
    %p103 = por %p101, %p102
    %p105 = scmp.ne.s32.totalorder %s88, %s104
    %p106 = scmp.eq.s32.totalorder %s14, 0
    %p107 = por %p105, %p106
    %p108 = scmp.le.s32.totalorder 1, %s8
    %p109 = scmp.lt.s32.totalorder %s8, 9
    %p110 = pnand %p108, %p109
    %p111 = pneg %p110
    // Predicated region
    $region9: #{tpu_custom_call.1} parent=5 // pred_check
      _
    $region10: #{tpu_custom_call.1} parent=5 // pred_check_branch
      %113 = sbr.rel (%p110) target = $region12
    $region11: #{tpu_custom_call.1} parent=5 // pred_region
      %s114 = ssub.s32 %s8, 1
      // Predicated region
      $region13: #{tpu_custom_call.1} parent=11 // pred_check
        %p115 = pneg %p72
      $region14: #{tpu_custom_call.1} parent=11 // pred_check_branch
        %117 = sbr.rel (%p115) target = $region16
      $region15: #{tpu_custom_call.1} parent=11 // pred_region
        %p118 = scmp.lt.s32.totalorder %s18, 0
        %s119 = scalar_select %p118, %s18, 0
        %s120 = smul.addr %s119, 4
        %s121 = scalar_lea.vmem %s1, %s120
      $region16: #{tpu_custom_call.1} parent=11 // pred_fallthru
        _
    $region12: #{tpu_custom_call.1} parent=5 // pred_fallthru
      _
    %p122 = scmp.lt.s32.totalorder %s8, 8
    // Predicated region
    $region17: #{tpu_custom_call.1} parent=5 // pred_check
      %p123 = pneg %p122
    $region18: #{tpu_custom_call.1} parent=5 // pred_check_branch
      %125 = sbr.rel (%p123) target = $region20
    $region19: #{tpu_custom_call.1} parent=5 // pred_region
      // Predicated region
      $region21: #{tpu_custom_call.1} parent=19 // pred_check
        %p126 = pneg %p40
      $region22: #{tpu_custom_call.1} parent=19 // pred_check_branch
        %128 = sbr.rel (%p126) target = $region24
      $region23: #{tpu_custom_call.1} parent=19 // pred_region
        %s129 = smul.u32 32, %s15
        %p130 = scmp.lt.s32.totalorder %s129, 255
        %s131 = scalar_select %p130, %s129, 255
        %s132 = smul.addr %s131, 2
        %s133 = smul.addr %s132, 4
        %s134 = scalar_lea.vmem %s0, %s133
        %s135 = smul.u32 32, %s15
      $region24: #{tpu_custom_call.1} parent=19 // pred_fallthru
        _
    $region20: #{tpu_custom_call.1} parent=5 // pred_fallthru
      _
    %p136 = scmp.le.s32.totalorder 1, %s8
    %p137 = scmp.lt.s32.totalorder %s8, 9
    %p138 = pnand %p136, %p137
    %p139 = pneg %p138
    // Predicated region
    $region25: #{tpu_custom_call.1} parent=5 // pred_check
      _
    $region26: #{tpu_custom_call.1} parent=5 // pred_check_branch
      %141 = sbr.rel (%p138) target = $region28
    $region27: #{tpu_custom_call.1} parent=5 // pred_region
      %s142 = ssub.s32 %s8, 1
      %s143 = smul.u32 32, %s17
      %p144 = scmp.lt.s32.totalorder %s143, 255
      %s145 = scalar_select %p144, %s143, 255
      %s146 = smul.addr %s145, 2
      %s147 = smul.addr %s146, 4
      %s148 = scalar_lea.vmem %s0, %s147
      %p149 = pneg %p46
      %p150 = pneg %p43
      %p151 = scmp.lt.s32.totalorder %s18, 0
      %s152 = scalar_select %p151, %s18, 0
      %s153 = smul.addr %s152, 4
      %s154 = scalar_lea.vmem %s1, %s153
      %p155 = pneg %p72
      %p156 = pneg %p69
      %p157 = pneg %p100
      %p158 = pneg %p97
      %s159 = smul.u32 32, %s17
      %p160 = scmp.lt.s32.totalorder %s159, 255
      %s161 = scalar_select %p160, %s159, 255
      %p162 = scmp.lt.s32.totalorder %s18, 0
      %s163 = scalar_select %p162, %s18, 0
      %s164 = sadd.s32 %s163, %s161
      %s165 = smul.addr %s164, 4
      %s166 = scalar_lea.vmem %s2, %s165
      %s167 = smul.u32 32, %s17
      %p168 = scmp.lt.s32.totalorder %s167, 255
      %s169 = scalar_select %p168, %s167, 255
      %s170 = smul.addr %s169, 2
      %s171 = smul.addr %s170, 4
      %s172 = scalar_lea.vmem %s0, %s171
      %s173 = smul.u32 32, %s17
      %p174 = scmp.lt.s32.totalorder %s18, 0
      %s175 = scalar_select %p174, %s18, 0
      %s176 = smul.addr %s175, 4
      %s177 = scalar_lea.vmem %s1, %s176
      %s178 = smul.u32 32, %s17
      %p179 = scmp.lt.s32.totalorder %s178, 255
      %s180 = scalar_select %p179, %s178, 255
      %p181 = scmp.lt.s32.totalorder %s18, 0
      %s182 = scalar_select %p181, %s18, 0
      %s183 = sadd.s32 %s182, %s180
      %s184 = smul.addr %s183, 4
      %s185 = scalar_lea.vmem %s2, %s184
      %s186 = smul.u32 32, %s17
      %v188 = vld [vmem:[%s172] sm:$0xff]
      %v189 = vld [vmem:[%s172 + $0x8] sm:$0xff]
      %v190 = vld [vmem:[%s172 + $0x10] sm:$0xff]
      %v191 = vld [vmem:[%s172 + $0x18] sm:$0xff]
      %v192 = vld [vmem:[%s172 + $0x20] sm:$0xff]
      %v193 = vld [vmem:[%s172 + $0x28] sm:$0xff]
      %v194 = vld [vmem:[%s172 + $0x30] sm:$0xff]
      %v195 = vld [vmem:[%s172 + $0x38] sm:$0xff]
      %v196 = vld [vmem:[%s172 + $0x40] sm:$0xff]
      %v197 = vld [vmem:[%s172 + $0x48] sm:$0xff]
      %v198 = vld [vmem:[%s172 + $0x50] sm:$0xff]
      %v199 = vld [vmem:[%s172 + $0x58] sm:$0xff]
      %v200 = vld [vmem:[%s172 + $0x60] sm:$0xff]
      %v201 = vld [vmem:[%s172 + $0x68] sm:$0xff]
      %v202 = vld [vmem:[%s172 + $0x70] sm:$0xff]
      %v203 = vld [vmem:[%s172 + $0x78] sm:$0xff]
      %v204 = vld [vmem:[%s172 + $0x80] sm:$0xff]
      %v205 = vld [vmem:[%s172 + $0x88] sm:$0xff]
      %v206 = vld [vmem:[%s172 + $0x90] sm:$0xff]
      %v207 = vld [vmem:[%s172 + $0x98] sm:$0xff]
      %v208 = vld [vmem:[%s172 + $0xa0] sm:$0xff]
      %v209 = vld [vmem:[%s172 + $0xa8] sm:$0xff]
      %v210 = vld [vmem:[%s172 + $0xb0] sm:$0xff]
      %v211 = vld [vmem:[%s172 + $0xb8] sm:$0xff]
      %v212 = vld [vmem:[%s172 + $0xc0] sm:$0xff]
      %v213 = vld [vmem:[%s172 + $0xc8] sm:$0xff]
      %v214 = vld [vmem:[%s172 + $0xd0] sm:$0xff]
      %v215 = vld [vmem:[%s172 + $0xd8] sm:$0xff]
      %v216 = vld [vmem:[%s172 + $0xe0] sm:$0xff]
      %v217 = vld [vmem:[%s172 + $0xe8] sm:$0xff]
      %v218 = vld [vmem:[%s172 + $0xf0] sm:$0xff]
      %v219 = vld [vmem:[%s172 + $0xf8] sm:$0xff]
      %v220 = vld [vmem:[%s177] sm:$0xf]
      %v221 = vld [vmem:[%s177 + $0x4] sm:$0xf]
      %v222 = vld [vmem:[%s177 + $0x8] sm:$0xf]
      %v223 = vld [vmem:[%s177 + $0xc] sm:$0xf]
      %v224 = vld [vmem:[%s177 + $0x10] sm:$0xf]
      %v225 = vld [vmem:[%s177 + $0x14] sm:$0xf]
      %v226 = vld [vmem:[%s177 + $0x18] sm:$0xf]
      %v227 = vld [vmem:[%s177 + $0x1c] sm:$0xf]
      %v228 = vld [vmem:[%s177 + $0x20] sm:$0xf]
      %v229 = vld [vmem:[%s177 + $0x24] sm:$0xf]
      %v230 = vld [vmem:[%s177 + $0x28] sm:$0xf]
      %v231 = vld [vmem:[%s177 + $0x2c] sm:$0xf]
      %v232 = vld [vmem:[%s177 + $0x30] sm:$0xf]
      %v233 = vld [vmem:[%s177 + $0x34] sm:$0xf]
      %v234 = vld [vmem:[%s177 + $0x38] sm:$0xf]
      %v235 = vld [vmem:[%s177 + $0x3c] sm:$0xf]
      %v236 = vld [vmem:[%s177 + $0x40] sm:$0xf]
      %v237 = vld [vmem:[%s177 + $0x44] sm:$0xf]
      %v238 = vld [vmem:[%s177 + $0x48] sm:$0x3]
      %v271 = vunpack.c.l.b16 %v188
      %v272 = vunpack.c.h.b16 %v188
      %v273 = vunpack.c.l.b16 %v189
      %v274 = vunpack.c.h.b16 %v189
      %v275 = vunpack.c.l.b16 %v190
      %v276 = vunpack.c.h.b16 %v190
      %v277 = vunpack.c.l.b16 %v191
      %v278 = vunpack.c.h.b16 %v191
      %v279 = vunpack.c.l.b16 %v192
      %v280 = vunpack.c.h.b16 %v192
      %v281 = vunpack.c.l.b16 %v193
      %v282 = vunpack.c.h.b16 %v193
      %v283 = vunpack.c.l.b16 %v194
      %v284 = vunpack.c.h.b16 %v194
      %v285 = vunpack.c.l.b16 %v195
      %v286 = vunpack.c.h.b16 %v195
      %v287 = vunpack.c.l.b16 %v196
      %v288 = vunpack.c.h.b16 %v196
      %v289 = vunpack.c.l.b16 %v197
      %v290 = vunpack.c.h.b16 %v197
      %v291 = vunpack.c.l.b16 %v198
      %v292 = vunpack.c.h.b16 %v198
      %v293 = vunpack.c.l.b16 %v199
      %v294 = vunpack.c.h.b16 %v199
      %v295 = vunpack.c.l.b16 %v200
      %v296 = vunpack.c.h.b16 %v200
      %v297 = vunpack.c.l.b16 %v201
      %v298 = vunpack.c.h.b16 %v201
      %v299 = vunpack.c.l.b16 %v202
      %v300 = vunpack.c.h.b16 %v202
      %v301 = vunpack.c.l.b16 %v203
      %v302 = vunpack.c.h.b16 %v203
      %v303 = vunpack.c.l.b16 %v204
      %v304 = vunpack.c.h.b16 %v204
      %v305 = vunpack.c.l.b16 %v205
      %v306 = vunpack.c.h.b16 %v205
      %v307 = vunpack.c.l.b16 %v206
      %v308 = vunpack.c.h.b16 %v206
      %v309 = vunpack.c.l.b16 %v207
      %v310 = vunpack.c.h.b16 %v207
      %v311 = vunpack.c.l.b16 %v208
      %v312 = vunpack.c.h.b16 %v208
      %v313 = vunpack.c.l.b16 %v209
      %v314 = vunpack.c.h.b16 %v209
      %v315 = vunpack.c.l.b16 %v210
      %v316 = vunpack.c.h.b16 %v210
      %v317 = vunpack.c.l.b16 %v211
      %v318 = vunpack.c.h.b16 %v211
      %v319 = vunpack.c.l.b16 %v212
      %v320 = vunpack.c.h.b16 %v212
      %v321 = vunpack.c.l.b16 %v213
      %v322 = vunpack.c.h.b16 %v213
      %v323 = vunpack.c.l.b16 %v214
      %v324 = vunpack.c.h.b16 %v214
      %v325 = vunpack.c.l.b16 %v215
      %v326 = vunpack.c.h.b16 %v215
      %v327 = vunpack.c.l.b16 %v216
      %v328 = vunpack.c.h.b16 %v216
      %v329 = vunpack.c.l.b16 %v217
      %v330 = vunpack.c.h.b16 %v217
      %v331 = vunpack.c.l.b16 %v218
      %v332 = vunpack.c.h.b16 %v218
      %v333 = vunpack.c.l.b16 %v219
      %v334 = vunpack.c.h.b16 %v219
      %v335 = vpack.c.b16 %v273, %v271
      %v336 = vpack.c.b16 %v274, %v272
      %v337 = vpack.c.b16 %v277, %v275
      %v338 = vpack.c.b16 %v278, %v276
      %v339 = vpack.c.b16 %v281, %v279
      %v340 = vpack.c.b16 %v282, %v280
      %v341 = vpack.c.b16 %v285, %v283
      %v342 = vpack.c.b16 %v286, %v284
      %v343 = vpack.c.b16 %v289, %v287
      %v344 = vpack.c.b16 %v290, %v288
      %v345 = vpack.c.b16 %v293, %v291
      %v346 = vpack.c.b16 %v294, %v292
      %v347 = vpack.c.b16 %v297, %v295
      %v348 = vpack.c.b16 %v298, %v296
      %v349 = vpack.c.b16 %v301, %v299
      %v350 = vpack.c.b16 %v302, %v300
      %v351 = vpack.c.b16 %v305, %v303
      %v352 = vpack.c.b16 %v306, %v304
      %v353 = vpack.c.b16 %v309, %v307
      %v354 = vpack.c.b16 %v310, %v308
      %v355 = vpack.c.b16 %v313, %v311
      %v356 = vpack.c.b16 %v314, %v312
      %v357 = vpack.c.b16 %v317, %v315
      %v358 = vpack.c.b16 %v318, %v316
      %v359 = vpack.c.b16 %v321, %v319
      %v360 = vpack.c.b16 %v322, %v320
      %v361 = vpack.c.b16 %v325, %v323
      %v362 = vpack.c.b16 %v326, %v324
      %v363 = vpack.c.b16 %v329, %v327
      %v364 = vpack.c.b16 %v330, %v328
      %v365 = vpack.c.b16 %v333, %v331
      %v366 = vpack.c.b16 %v334, %v332
      %v402 = vunpack.c.l.b16 %v220
      %v403 = vunpack.c.l.b16 %v221
      %v404 = vunpack.c.l.b16 %v222
      %v405 = vunpack.c.l.b16 %v223
      %v406 = vunpack.c.l.b16 %v224
      %v407 = vunpack.c.l.b16 %v225
      %v408 = vunpack.c.l.b16 %v226
      %v409 = vunpack.c.l.b16 %v227
      %v410 = vunpack.c.l.b16 %v228
      %v411 = vunpack.c.l.b16 %v229
      %v412 = vunpack.c.l.b16 %v230
      %v413 = vunpack.c.l.b16 %v231
      %v414 = vunpack.c.l.b16 %v232
      %v415 = vunpack.c.l.b16 %v233
      %v416 = vunpack.c.l.b16 %v234
      %v417 = vunpack.c.l.b16 %v235
      %v418 = vunpack.c.l.b16 %v236
      %v419 = vunpack.c.l.b16 %v237
      %v420 = vunpack.c.l.b16 %v238
      %v421 = vpack.c.b16 %v403, %v402
      %v422 = vpack.c.b16 %v405, %v404
      %v423 = vpack.c.b16 %v407, %v406
      %v424 = vpack.c.b16 %v409, %v408
      %v425 = vpack.c.b16 %v411, %v410
      %v426 = vpack.c.b16 %v413, %v412
      %v427 = vpack.c.b16 %v415, %v414
      %v428 = vpack.c.b16 %v417, %v416
      %v429 = vpack.c.b16 %v419, %v418
      %v430 = vpack.c.b16 %v420, %v420
      %vm440 = vcmask 154624
      %v442 = vsel %vm440, %v336, 0
      %v445 = vsel %vm440, %v338, 0
      %v448 = vsel %vm440, %v340, 0
      %v451 = vsel %vm440, %v342, 0
      %v454 = vsel %vm440, %v344, 0
      %v457 = vsel %vm440, %v346, 0
      %v460 = vsel %vm440, %v348, 0
      %v463 = vsel %vm440, %v350, 0
      %v466 = vsel %vm440, %v352, 0
      %v469 = vsel %vm440, %v354, 0
      %v472 = vsel %vm440, %v356, 0
      %v475 = vsel %vm440, %v358, 0
      %v478 = vsel %vm440, %v360, 0
      %v481 = vsel %vm440, %v362, 0
      %v484 = vsel %vm440, %v364, 0
      %v487 = vsel %vm440, %v366, 0
      %vm489 = vcmask 1040384
      %vm490 = vcmask 1041408
      %v491 = vsel %vm489, 4294967295, 65535
      %v492 = vsel %vm490, %v491, 0
      %v494 = vand.u32 %v430, %v492
      %496 = vmatprep.subr.bf16.mxu0 0
      %497 = vmatpush1.bf16.msra.mxu0 %v421
      %498 = vmatprep.subr.bf16.mxu0 0
      %499 = vmatpush1.bf16.msra.mxu0 %v422
      %500 = vmatprep.subr.bf16.mxu0 0
      %501 = vmatpush1.bf16.msra.mxu0 %v423
      %502 = vmatprep.subr.bf16.mxu0 0
      %503 = vmatpush1.bf16.msra.mxu0 %v424
      %504 = vmatprep.subr.bf16.mxu0 0
      %505 = vmatpush1.bf16.msra.mxu0 %v425
      %506 = vmatprep.subr.bf16.mxu0 0
      %507 = vmatpush1.bf16.msra.mxu0 %v426
      %508 = vmatprep.subr.bf16.mxu0 0
      %509 = vmatpush1.bf16.msra.mxu0 %v427
      %510 = vmatprep.subr.bf16.mxu0 0
      %511 = vmatpush1.bf16.msra.mxu0 %v428
      %512 = vmatprep.subr.bf16.mxu0 0
      %513 = vmatpush1.bf16.msra.mxu0 %v429
      %514 = vmatprep.subr.bf16.mxu0 0
      %515 = vmatpush1.bf16.msra.mxu0 %v494
      %516 = vmatprep.subr.bf16.mxu0 0
      %517 = vmatpush1.bf16.msra.mxu0 0
      %518 = vmatprep.subr.bf16.mxu0 0
      %519 = vmatpush1.bf16.msra.mxu0 0
      %520 = vmatprep.subr.bf16.mxu0 0
      %521 = vmatpush1.bf16.msra.mxu0 0
      %522 = vmatprep.subr.bf16.mxu0 0
      %523 = vmatpush1.bf16.msra.mxu0 0
      %524 = vmatprep.subr.bf16.mxu0 0
      %525 = vmatpush1.bf16.msra.mxu0 0
      %526 = vmatprep.subr.bf16.mxu0 0
      %527 = vmatpush1.bf16.msra.mxu0 0
      %528 = vmatprep.mubr.bf16.mxu0 %v442
      %529 = vmatmul.mubr.bf16.gmra.mrb[0].mxu0 %v335
      %v530 = vpop.f32.mrb[0].mxu0
      %v531 = vadd.f32 0.0, %v530
      %v532 = vpop.f32.mrb[0].mxu0
      %v533 = vpop.f32.mrb[0].mxu0
      %v534 = vadd.f32 0.0, %v533
      %v535 = vpop.f32.mrb[0].mxu0
      %536 = vmatprep.mubr.bf16.mxu0 %v445
      %537 = vmatmul.mubr.bf16.gmra.mrb[0].mxu0 %v337
      %v538 = vpop.f32.mrb[0].mxu0
      %v539 = vadd.f32 0.0, %v538
      %v540 = vpop.f32.mrb[0].mxu0
      %v541 = vpop.f32.mrb[0].mxu0
      %v542 = vadd.f32 0.0, %v541
      %v543 = vpop.f32.mrb[0].mxu0
      %544 = vmatprep.mubr.bf16.mxu0 %v448
      %545 = vmatmul.mubr.bf16.gmra.mrb[0].mxu0 %v339
      %v546 = vpop.f32.mrb[0].mxu0
      %v547 = vadd.f32 0.0, %v546
      %v548 = vpop.f32.mrb[0].mxu0
      %v549 = vpop.f32.mrb[0].mxu0
      %v550 = vadd.f32 0.0, %v549
      %v551 = vpop.f32.mrb[0].mxu0
      %552 = vmatprep.mubr.bf16.mxu0 %v451
      %553 = vmatmul.mubr.bf16.gmra.mrb[0].mxu0 %v341
      %v554 = vpop.f32.mrb[0].mxu0
      %v555 = vadd.f32 0.0, %v554
      %v556 = vpop.f32.mrb[0].mxu0
      %v557 = vpop.f32.mrb[0].mxu0
      %v558 = vadd.f32 0.0, %v557
      %v559 = vpop.f32.mrb[0].mxu0
      %560 = vmatprep.mubr.bf16.mxu0 %v454
      %561 = vmatmul.mubr.bf16.gmra.mrb[0].mxu0 %v343
      %v562 = vpop.f32.mrb[0].mxu0
      %v563 = vadd.f32 0.0, %v562
      %v564 = vpop.f32.mrb[0].mxu0
      %v565 = vpop.f32.mrb[0].mxu0
      %v566 = vadd.f32 0.0, %v565
      %v567 = vpop.f32.mrb[0].mxu0
      %568 = vmatprep.mubr.bf16.mxu0 %v457
      %569 = vmatmul.mubr.bf16.gmra.mrb[0].mxu0 %v345
      %v570 = vpop.f32.mrb[0].mxu0
      %v571 = vadd.f32 0.0, %v570
      %v572 = vpop.f32.mrb[0].mxu0
      %v573 = vpop.f32.mrb[0].mxu0
      %v574 = vadd.f32 0.0, %v573
      %v575 = vpop.f32.mrb[0].mxu0
      %576 = vmatprep.mubr.bf16.mxu0 %v460
      %577 = vmatmul.mubr.bf16.gmra.mrb[0].mxu0 %v347
      %v578 = vpop.f32.mrb[0].mxu0
      %v579 = vadd.f32 0.0, %v578
      %v580 = vpop.f32.mrb[0].mxu0
      %v581 = vpop.f32.mrb[0].mxu0
      %v582 = vadd.f32 0.0, %v581
      %v583 = vpop.f32.mrb[0].mxu0
      %584 = vmatprep.mubr.bf16.mxu0 %v463
      %585 = vmatmul.mubr.bf16.gmra.mrb[0].mxu0 %v349
      %v586 = vpop.f32.mrb[0].mxu0
      %v587 = vadd.f32 0.0, %v586
      %v588 = vpop.f32.mrb[0].mxu0
      %v589 = vpop.f32.mrb[0].mxu0
      %v590 = vadd.f32 0.0, %v589
      %v591 = vpop.f32.mrb[0].mxu0
      %592 = vmatprep.mubr.bf16.mxu0 %v466
      %593 = vmatmul.mubr.bf16.gmra.mrb[0].mxu0 %v351
      %v594 = vpop.f32.mrb[0].mxu0
      %v595 = vadd.f32 0.0, %v594
      %v596 = vpop.f32.mrb[0].mxu0
      %v597 = vpop.f32.mrb[0].mxu0
      %v598 = vadd.f32 0.0, %v597
      %v599 = vpop.f32.mrb[0].mxu0
      %600 = vmatprep.mubr.bf16.mxu0 %v469
      %601 = vmatmul.mubr.bf16.gmra.mrb[0].mxu0 %v353
      %v602 = vpop.f32.mrb[0].mxu0
      %v603 = vadd.f32 0.0, %v602
      %v604 = vpop.f32.mrb[0].mxu0
      %v605 = vpop.f32.mrb[0].mxu0
      %v606 = vadd.f32 0.0, %v605
      %v607 = vpop.f32.mrb[0].mxu0
      %608 = vmatprep.mubr.bf16.mxu0 %v472
      %609 = vmatmul.mubr.bf16.gmra.mrb[0].mxu0 %v355
      %v610 = vpop.f32.mrb[0].mxu0
      %v611 = vadd.f32 0.0, %v610
      %v612 = vpop.f32.mrb[0].mxu0
      %v613 = vpop.f32.mrb[0].mxu0
      %v614 = vadd.f32 0.0, %v613
      %v615 = vpop.f32.mrb[0].mxu0
      %616 = vmatprep.mubr.bf16.mxu0 %v475
      %617 = vmatmul.mubr.bf16.gmra.mrb[0].mxu0 %v357
      %v618 = vpop.f32.mrb[0].mxu0
      %v619 = vadd.f32 0.0, %v618
      %v620 = vpop.f32.mrb[0].mxu0
      %v621 = vpop.f32.mrb[0].mxu0
      %v622 = vadd.f32 0.0, %v621
      %v623 = vpop.f32.mrb[0].mxu0
      %624 = vmatprep.mubr.bf16.mxu0 %v478
      %625 = vmatmul.mubr.bf16.gmra.mrb[0].mxu0 %v359
      %v626 = vpop.f32.mrb[0].mxu0
      %v627 = vadd.f32 0.0, %v626
      %v628 = vpop.f32.mrb[0].mxu0
      %v629 = vpop.f32.mrb[0].mxu0
      %v630 = vadd.f32 0.0, %v629
      %v631 = vpop.f32.mrb[0].mxu0
      %632 = vmatprep.mubr.bf16.mxu0 %v481
      %633 = vmatmul.mubr.bf16.gmra.mrb[0].mxu0 %v361
      %v634 = vpop.f32.mrb[0].mxu0
      %v635 = vadd.f32 0.0, %v634
      %v636 = vpop.f32.mrb[0].mxu0
      %v637 = vpop.f32.mrb[0].mxu0
      %v638 = vadd.f32 0.0, %v637
      %v639 = vpop.f32.mrb[0].mxu0
      %640 = vmatprep.mubr.bf16.mxu0 %v484
      %641 = vmatmul.mubr.bf16.gmra.mrb[0].mxu0 %v363
      %v642 = vpop.f32.mrb[0].mxu0
      %v643 = vadd.f32 0.0, %v642
      %v644 = vpop.f32.mrb[0].mxu0
      %v645 = vpop.f32.mrb[0].mxu0
      %v646 = vadd.f32 0.0, %v645
      %v647 = vpop.f32.mrb[0].mxu0
      %648 = vmatprep.mubr.bf16.mxu0 %v487
      %649 = vmatmul.mubr.bf16.gmra.mrb[0].mxu0 %v365
      %v650 = vpop.f32.mrb[0].mxu0
      %v651 = vadd.f32 0.0, %v650
      %v652 = vpop.f32.mrb[0].mxu0
      %v653 = vpop.f32.mrb[0].mxu0
      %v654 = vadd.f32 0.0, %v653
      %v655 = vpop.f32.mrb[0].mxu0
      %656 = vdwg.mxu0
      %v657 = vpack.c.bf16 %v534, %v531
      %v658 = vpack.c.bf16 %v542, %v539
      %v659 = vpack.c.bf16 %v550, %v547
      %v660 = vpack.c.bf16 %v558, %v555
      %v661 = vpack.c.bf16 %v566, %v563
      %v662 = vpack.c.bf16 %v574, %v571
      %v663 = vpack.c.bf16 %v582, %v579
      %v664 = vpack.c.bf16 %v590, %v587
      %v665 = vpack.c.bf16 %v598, %v595
      %v666 = vpack.c.bf16 %v606, %v603
      %v667 = vpack.c.bf16 %v614, %v611
      %v668 = vpack.c.bf16 %v622, %v619
      %v669 = vpack.c.bf16 %v630, %v627
      %v670 = vpack.c.bf16 %v638, %v635
      %v671 = vpack.c.bf16 %v646, %v643
      %v672 = vpack.c.bf16 %v654, %v651
      %v689 = vunpack.c.l.b16 %v657
      %v690 = vunpack.c.h.b16 %v657
      %v691 = vunpack.c.l.b16 %v658
      %v692 = vunpack.c.h.b16 %v658
      %v693 = vunpack.c.l.b16 %v659
      %v694 = vunpack.c.h.b16 %v659
      %v695 = vunpack.c.l.b16 %v660
      %v696 = vunpack.c.h.b16 %v660
      %v697 = vunpack.c.l.b16 %v661
      %v698 = vunpack.c.h.b16 %v661
      %v699 = vunpack.c.l.b16 %v662
      %v700 = vunpack.c.h.b16 %v662
      %v701 = vunpack.c.l.b16 %v663
      %v702 = vunpack.c.h.b16 %v663
      %v703 = vunpack.c.l.b16 %v664
      %v704 = vunpack.c.h.b16 %v664
      %v705 = vunpack.c.l.b16 %v665
      %v706 = vunpack.c.h.b16 %v665
      %v707 = vunpack.c.l.b16 %v666
      %v708 = vunpack.c.h.b16 %v666
      %v709 = vunpack.c.l.b16 %v667
      %v710 = vunpack.c.h.b16 %v667
      %v711 = vunpack.c.l.b16 %v668
      %v712 = vunpack.c.h.b16 %v668
      %v713 = vunpack.c.l.b16 %v669
      %v714 = vunpack.c.h.b16 %v669
      %v715 = vunpack.c.l.b16 %v670
      %v716 = vunpack.c.h.b16 %v670
      %v717 = vunpack.c.l.b16 %v671
      %v718 = vunpack.c.h.b16 %v671
      %v719 = vunpack.c.l.b16 %v672
      %v720 = vunpack.c.h.b16 %v672
      %v721 = vpack.c.b16 %v689, %v689
      %v722 = vpack.c.b16 %v690, %v690
      %v723 = vpack.c.b16 %v691, %v691
      %v724 = vpack.c.b16 %v692, %v692
      %v725 = vpack.c.b16 %v693, %v693
      %v726 = vpack.c.b16 %v694, %v694
      %v727 = vpack.c.b16 %v695, %v695
      %v728 = vpack.c.b16 %v696, %v696
      %v729 = vpack.c.b16 %v697, %v697
      %v730 = vpack.c.b16 %v698, %v698
      %v731 = vpack.c.b16 %v699, %v699
      %v732 = vpack.c.b16 %v700, %v700
      %v733 = vpack.c.b16 %v701, %v701
      %v734 = vpack.c.b16 %v702, %v702
      %v735 = vpack.c.b16 %v703, %v703
      %v736 = vpack.c.b16 %v704, %v704
      %v737 = vpack.c.b16 %v705, %v705
      %v738 = vpack.c.b16 %v706, %v706
      %v739 = vpack.c.b16 %v707, %v707
      %v740 = vpack.c.b16 %v708, %v708
      %v741 = vpack.c.b16 %v709, %v709
      %v742 = vpack.c.b16 %v710, %v710
      %v743 = vpack.c.b16 %v711, %v711
      %v744 = vpack.c.b16 %v712, %v712
      %v745 = vpack.c.b16 %v713, %v713
      %v746 = vpack.c.b16 %v714, %v714
      %v747 = vpack.c.b16 %v715, %v715
      %v748 = vpack.c.b16 %v716, %v716
      %v749 = vpack.c.b16 %v717, %v717
      %v750 = vpack.c.b16 %v718, %v718
      %v751 = vpack.c.b16 %v719, %v719
      %v752 = vpack.c.b16 %v720, %v720
      %vm785 = vcmask 519168
      %786 = vst.msk [vmem:[%s185] sm:$0xf] %vm785, %v721
      %787 = vst.msk [vmem:[%s185 + $0x4] sm:$0xf] %vm785, %v722
      %788 = vst.msk [vmem:[%s185 + $0x8] sm:$0xf] %vm785, %v723
      %789 = vst.msk [vmem:[%s185 + $0xc] sm:$0xf] %vm785, %v724
      %790 = vst.msk [vmem:[%s185 + $0x10] sm:$0xf] %vm785, %v725
      %791 = vst.msk [vmem:[%s185 + $0x14] sm:$0xf] %vm785, %v726
      %792 = vst.msk [vmem:[%s185 + $0x18] sm:$0xf] %vm785, %v727
      %793 = vst.msk [vmem:[%s185 + $0x1c] sm:$0xf] %vm785, %v728
      %794 = vst.msk [vmem:[%s185 + $0x20] sm:$0xf] %vm785, %v729
      %795 = vst.msk [vmem:[%s185 + $0x24] sm:$0xf] %vm785, %v730
      %796 = vst.msk [vmem:[%s185 + $0x28] sm:$0xf] %vm785, %v731
      %797 = vst.msk [vmem:[%s185 + $0x2c] sm:$0xf] %vm785, %v732
      %798 = vst.msk [vmem:[%s185 + $0x30] sm:$0xf] %vm785, %v733
      %799 = vst.msk [vmem:[%s185 + $0x34] sm:$0xf] %vm785, %v734
      %800 = vst.msk [vmem:[%s185 + $0x38] sm:$0xf] %vm785, %v735
      %801 = vst.msk [vmem:[%s185 + $0x3c] sm:$0xf] %vm785, %v736
      %802 = vst.msk [vmem:[%s185 + $0x40] sm:$0xf] %vm785, %v737
      %803 = vst.msk [vmem:[%s185 + $0x44] sm:$0xf] %vm785, %v738
      %804 = vst.msk [vmem:[%s185 + $0x48] sm:$0xf] %vm785, %v739
      %805 = vst.msk [vmem:[%s185 + $0x4c] sm:$0xf] %vm785, %v740
      %806 = vst.msk [vmem:[%s185 + $0x50] sm:$0xf] %vm785, %v741
      %807 = vst.msk [vmem:[%s185 + $0x54] sm:$0xf] %vm785, %v742
      %808 = vst.msk [vmem:[%s185 + $0x58] sm:$0xf] %vm785, %v743
      %809 = vst.msk [vmem:[%s185 + $0x5c] sm:$0xf] %vm785, %v744
      %810 = vst.msk [vmem:[%s185 + $0x60] sm:$0xf] %vm785, %v745
      %811 = vst.msk [vmem:[%s185 + $0x64] sm:$0xf] %vm785, %v746
      %812 = vst.msk [vmem:[%s185 + $0x68] sm:$0xf] %vm785, %v747
      %813 = vst.msk [vmem:[%s185 + $0x6c] sm:$0xf] %vm785, %v748
      %814 = vst.msk [vmem:[%s185 + $0x70] sm:$0xf] %vm785, %v749
      %815 = vst.msk [vmem:[%s185 + $0x74] sm:$0xf] %vm785, %v750
      %816 = vst.msk [vmem:[%s185 + $0x78] sm:$0xf] %vm785, %v751
      %817 = vst.msk [vmem:[%s185 + $0x7c] sm:$0xf] %vm785, %v752
      %s818 = smul.u32 32, %s17
      %p819 = scmp.lt.s32.totalorder %s818, 255
      %s820 = scalar_select %p819, %s818, 255
      %p821 = scmp.lt.s32.totalorder %s18, 0
      %s822 = scalar_select %p821, %s18, 0
      %s823 = sadd.s32 %s822, %s820
      %s824 = smul.addr %s823, 4
      %s825 = scalar_lea.vmem %s2, %s824
      // Predicated region
      $region29: #{tpu_custom_call.1} parent=27 // pred_check
        %p826 = pneg %p97
      $region30: #{tpu_custom_call.1} parent=27 // pred_check_branch
        %828 = sbr.rel (%p826) target = $region32
      $region31: #{tpu_custom_call.1} parent=27 // pred_region
        %s829 = smul.u32 32, %s17
      $region32: #{tpu_custom_call.1} parent=27 // pred_fallthru
        _
    $region28: #{tpu_custom_call.1} parent=5 // pred_fallthru
      _
    %p830 = scmp.le.s32.totalorder 2, %s8
    // Predicated region
    $region33: #{tpu_custom_call.1} parent=5 // pred_check
      %p831 = pneg %p830
    $region34: #{tpu_custom_call.1} parent=5 // pred_check_branch
      %833 = sbr.rel (%p831) target = $region36
    $region35: #{tpu_custom_call.1} parent=5 // pred_region
      %s834 = ssub.s32 %s8, 2
      // Predicated region
      $region37: #{tpu_custom_call.1} parent=35 // pred_check
        %p835 = pneg %p103
      $region38: #{tpu_custom_call.1} parent=35 // pred_check_branch
        %837 = sbr.rel (%p835) target = $region40
      $region39: #{tpu_custom_call.1} parent=35 // pred_region
        %s838 = smul.u32 32, %s19
        %p839 = scmp.lt.s32.totalorder %s838, 255
        %s840 = scalar_select %p839, %s838, 255
        %p841 = scmp.lt.s32.totalorder %s20, 0
        %s842 = scalar_select %p841, %s20, 0
        %s843 = sadd.s32 %s842, %s840
        %s844 = smul.addr %s843, 4
        %s845 = scalar_lea.vmem %s2, %s844
      $region40: #{tpu_custom_call.1} parent=35 // pred_fallthru
        _
    $region36: #{tpu_custom_call.1} parent=5 // pred_fallthru
      _
  $region6: #{tpu_custom_call.1} parent=0 // loop_footer
    %s12 = sadd.s32 1, %s8
  $region7: #{tpu_custom_call.1} parent=0 // loop_footer_branch
    %7 = sbr.rel target = $region3
  $region8: #{tpu_custom_call.1} parent=0 // loop_exit
    _

</llo_original>
